<compile_context>
chip_gen: v7x
topology: tpu7x:2x2x1
jax: 0.10.0
libtpu: 0.0.40
codegen_flags: <defaults>
</compile_context>

<pallas_src>
import functools

import jax
import jax.numpy as jnp
from jax import lax
from jax.experimental import pallas as pl
from jax.experimental.pallas import tpu as pltpu


def _tv_partial_kernel(x_ref, out_ref, *, ns):
    """Partial sums of |height diff| and |width diff| over an (nb, H, W) block."""
    nb, H, W = x_ref.shape

    def slab_sums(x):
        x = x.astype(jnp.float32)
        # Height diffs: sublane roll keeps the full (ns, H, W) shape; row 0 of
        # the rolled diff pairs x[:,0,:] with x[:,H-1,:] (the wrap), so its
        # sum is subtracted instead of masking every element.
        dh = jnp.abs(x - pltpu.roll(x, shift=1, axis=1))
        h = jnp.sum(dh) - jnp.sum(jnp.abs(x[:, 0:1, :] - x[:, H - 1:H, :]))
        # Width diffs: lane roll; wrapped column 0 subtracted likewise.
        dv = jnp.abs(x - pltpu.roll(x, shift=1, axis=2))
        v = jnp.sum(dv) - jnp.sum(jnp.abs(x[:, :, 0:1] - x[:, :, W - 1:W]))
        # NOTE: with non-finite pixels in the wrapped row/column this differs
        # from PyTorch (which never touches those pairs); exact for finite
        # inputs, and the zero padding planes contribute exactly 0.
        return h, v

    n_full = nb // ns
    rem = nb - n_full * ns

    h_acc = jnp.float32(0.0)
    v_acc = jnp.float32(0.0)

    if n_full == 1 and rem == 0:
        # Whole block fits in one compute slab — no loop needed.
        h_acc, v_acc = slab_sums(x_ref[...])
    else:
        if n_full > 0:
            def body(s, carry):
                h, v = carry
                dh, dv = slab_sums(x_ref[pl.ds(s * ns, ns), :, :])
                return h + dh, v + dv

            h_acc, v_acc = lax.fori_loop(0, n_full, body, (h_acc, v_acc))
        if rem > 0:
            dh, dv = slab_sums(x_ref[pl.ds(n_full * ns, rem), :, :])
            h_acc = h_acc + dh
            v_acc = v_acc + dv

    # Lane-dense writeback: two broadcast rows, no iota/where scatter.
    out_ref[0, 0, :] = jnp.full((128,), h_acc, dtype=jnp.float32)
    out_ref[0, 1, :] = jnp.full((128,), v_acc, dtype=jnp.float32)


def total_variation_loss(image: jax.Array) -> jax.Array:
    """TV loss for an NCHW image, matching the PyTorch reference module."""
    B, C, H, W = image.shape
    N = B * C
    x = image.reshape(N, H, W)

    plane_in_bytes = H * W * jnp.dtype(image.dtype).itemsize
    plane_f32_bytes = H * W * 4

    # ~8 MiB streamed input block (double-buffered -> ~16 MiB): big enough to
    # amortize the ~0.35 us/grid-step overhead, small enough for v7x's 64 MiB
    # VMEM.  (On v5e/v6e this could be raised to ~16 MiB, but one safe code
    # path is kept here.)
    target_block_bytes = 8 * 1024 * 1024
    nb0 = max(1, target_block_bytes // max(1, plane_in_bytes))
    grid_n = max(1, pl.cdiv(N, nb0))
    if grid_n == 1 and N >= 2:
        grid_n = 2                       # keep both v7x TensorCores busy
    nb = pl.cdiv(N, grid_n)              # even split; pad <= grid_n - 1 planes

    # ~1 MiB f32 compute sub-slab inside the kernel bounds the roll/diff
    # temporaries so peak VMEM stays well under the scoped limit.
    ns = max(1, min(nb, (1024 * 1024) // max(1, plane_f32_bytes)))

    n_pad = grid_n * nb
    if n_pad != N:
        # Zero planes contribute exactly 0 to both diff sums.
        x = jnp.concatenate([x, jnp.zeros((n_pad - N, H, W), x.dtype)], axis=0)

    partials = pl.pallas_call(
        functools.partial(_tv_partial_kernel, ns=ns),
        out_shape=jax.ShapeDtypeStruct((grid_n, 2, 128), jnp.float32),
        grid_spec=pltpu.PrefetchScalarGridSpec(
            num_scalar_prefetch=0,
            grid=(grid_n,),
            in_specs=[pl.BlockSpec((nb, H, W), lambda i: (i, 0, 0))],
            out_specs=pl.BlockSpec((1, 2, 128), lambda i: (i, 0, 0)),
        ),
        compiler_params=pltpu.CompilerParams(
            # Independent per-block partial sums -> grid axis is safely
            # parallel (megacore sharding on v7x).
            dimension_semantics=("parallel",),
            vmem_limit_bytes=32 * 1024 * 1024,
        ),
    )(x)

    h_total = jnp.sum(partials[:, 0, 0])
    v_total = jnp.sum(partials[:, 1, 0])

    # NOTE: H == 1 or W == 1 gives a zero denominator (NaN), identical to the
    # PyTorch reference's mean over an empty diff tensor.
    h_count = jnp.float32(N * (H - 1) * W)   # elements in horizontal_diff
    v_count = jnp.float32(N * H * (W - 1))   # elements in vertical_diff
    return (h_total / h_count + v_total / v_count) * jnp.float32(0.5)


def _reference_tv_loss(image: jax.Array) -> jax.Array:
    hdiff = jnp.abs(image[:, :, 1:, :] - image[:, :, :-1, :]).mean()
    vdiff = jnp.abs(image[:, :, :, 1:] - image[:, :, :, :-1]).mean()
    return (hdiff + vdiff) / 2.0


if __name__ == "__main__":
    key = jax.random.PRNGKey(0)
    B, C, H, W = 2, 4, 16, 16
    image = jax.random.normal(key, (B, C, H, W), dtype=jnp.float32)

    loss = jax.block_until_ready(total_variation_loss(image))
    ref = jax.block_until_ready(_reference_tv_loss(image))

    assert jnp.allclose(loss, ref, rtol=1e-5, atol=1e-6), (loss, ref)
    print("KERNEL_OK")
</pallas_src>

<mosaic_0001>
module attributes {stable_mosaic.version = 11 : i64} {
  func.func @_tv_partial_kernel(%arg0: i32, %arg1: memref<4x16x16xf32, #tpu.memory_space<vmem>>, %arg2: memref<1x2x128xf32, #tpu.memory_space<vmem>>) attributes {dimension_semantics = [#tpu.dimension_semantics<parallel>], iteration_bounds = array<i64: 2>, scalar_prefetch = 0 : i64, scratch_operands = 0 : i64, tpu.core_type = #tpu.core_type<tc>, window_params = [{transform_indices = @transform_0, window_bounds = array<i64: 4, 16, 16>}, {transform_indices = @transform_1, window_bounds = array<i64: 1, 2, 128>}]} {
    %c0 = arith.constant 0 : index
    %c0_0 = arith.constant 0 : index
    %c0_1 = arith.constant 0 : index
    %0 = vector.load %arg1[%c0, %c0_0, %c0_1] : memref<4x16x16xf32, #tpu.memory_space<vmem>>, vector<4x16x16xf32>
    %c1_i32 = arith.constant 1 : i32
    %1 = tpu.dynamic_rotate %0 by %c1_i32 dim 1 : vector<4x16x16xf32>, i32 -> vector<4x16x16xf32>
    %2 = arith.subf %0, %1 : vector<4x16x16xf32>
    %3 = math.absf %2 : vector<4x16x16xf32>
    %4 = vector.shape_cast %3 : vector<4x16x16xf32> to vector<1x4x16x16xf32>
    %cst = arith.constant dense<0.000000e+00> : vector<1xf32>
    %5 = vector.multi_reduction <add>, %4, %cst [1, 2, 3] : vector<1x4x16x16xf32> to vector<1xf32>
    %6 = vector.shape_cast %5 : vector<1xf32> to vector<1x1x1x1xf32>
    %7 = vector.extract %6[0, 0, 0, 0] : f32 from vector<1x1x1x1xf32>
    %8 = vector.extract_strided_slice %0 {offsets = [0, 0, 0], sizes = [4, 1, 16], strides = [1, 1, 1]} : vector<4x16x16xf32> to vector<4x1x16xf32>
    %9 = vector.extract_strided_slice %0 {offsets = [0, 15, 0], sizes = [4, 1, 16], strides = [1, 1, 1]} : vector<4x16x16xf32> to vector<4x1x16xf32>
    %10 = arith.subf %8, %9 : vector<4x1x16xf32>
    %11 = math.absf %10 : vector<4x1x16xf32>
    %12 = vector.shape_cast %11 : vector<4x1x16xf32> to vector<1x4x1x16xf32>
    %cst_2 = arith.constant dense<0.000000e+00> : vector<1xf32>
    %13 = vector.multi_reduction <add>, %12, %cst_2 [1, 2, 3] : vector<1x4x1x16xf32> to vector<1xf32>
    %14 = vector.shape_cast %13 : vector<1xf32> to vector<1x1x1x1xf32>
    %15 = vector.extract %14[0, 0, 0, 0] : f32 from vector<1x1x1x1xf32>
    %16 = arith.subf %7, %15 : f32
    %c1_i32_3 = arith.constant 1 : i32
    %17 = tpu.dynamic_rotate %0 by %c1_i32_3 dim 2 : vector<4x16x16xf32>, i32 -> vector<4x16x16xf32>
    %18 = arith.subf %0, %17 : vector<4x16x16xf32>
    %19 = math.absf %18 : vector<4x16x16xf32>
    %20 = vector.shape_cast %19 : vector<4x16x16xf32> to vector<1x4x16x16xf32>
    %cst_4 = arith.constant dense<0.000000e+00> : vector<1xf32>
    %21 = vector.multi_reduction <add>, %20, %cst_4 [1, 2, 3] : vector<1x4x16x16xf32> to vector<1xf32>
    %22 = vector.shape_cast %21 : vector<1xf32> to vector<1x1x1x1xf32>
    %23 = vector.extract %22[0, 0, 0, 0] : f32 from vector<1x1x1x1xf32>
    %24 = vector.extract_strided_slice %0 {offsets = [0, 0, 0], sizes = [4, 16, 1], strides = [1, 1, 1]} : vector<4x16x16xf32> to vector<4x16x1xf32>
    %25 = vector.extract_strided_slice %0 {offsets = [0, 0, 15], sizes = [4, 16, 1], strides = [1, 1, 1]} : vector<4x16x16xf32> to vector<4x16x1xf32>
    %26 = arith.subf %24, %25 : vector<4x16x1xf32>
    %27 = math.absf %26 : vector<4x16x1xf32>
    %28 = vector.shape_cast %27 : vector<4x16x1xf32> to vector<1x4x16x1xf32>
    %cst_5 = arith.constant dense<0.000000e+00> : vector<1xf32>
    %29 = vector.multi_reduction <add>, %28, %cst_5 [1, 2, 3] : vector<1x4x16x1xf32> to vector<1xf32>
    %30 = vector.shape_cast %29 : vector<1xf32> to vector<1x1x1x1xf32>
    %31 = vector.extract %30[0, 0, 0, 0] : f32 from vector<1x1x1x1xf32>
    %32 = arith.subf %23, %31 : f32
    %33 = vector.broadcast %16 : f32 to vector<128xf32>
    %c0_6 = arith.constant 0 : index
    %c0_7 = arith.constant 0 : index
    %c0_8 = arith.constant 0 : index
    %34 = vector.load %arg2[%c0_6, %c0_7, %c0_8] : memref<1x2x128xf32, #tpu.memory_space<vmem>>, vector<1x1x128xf32>
    %35 = vector.shape_cast %34 : vector<1x1x128xf32> to vector<128xf32>
    %36 = vector.shape_cast %33 : vector<128xf32> to vector<1x1x128xf32>
    tpu.vector_store %arg2[%c0_6, %c0_7, %c0_8], %36 {strides = array<i32>} : memref<1x2x128xf32, #tpu.memory_space<vmem>>, vector<1x1x128xf32>,
    %37 = vector.broadcast %32 : f32 to vector<128xf32>
    %c0_9 = arith.constant 0 : index
    %c1 = arith.constant 1 : index
    %c0_10 = arith.constant 0 : index
    %38 = vector.load %arg2[%c0_9, %c1, %c0_10] : memref<1x2x128xf32, #tpu.memory_space<vmem>>, vector<1x1x128xf32>
    %39 = vector.shape_cast %38 : vector<1x1x128xf32> to vector<128xf32>
    %40 = vector.shape_cast %37 : vector<128xf32> to vector<1x1x128xf32>
    tpu.vector_store %arg2[%c0_9, %c1, %c0_10], %40 {strides = array<i32>} : memref<1x2x128xf32, #tpu.memory_space<vmem>>, vector<1x1x128xf32>,
    return
  }
  func.func @transform_0(%arg0: i32) -> (i32, i32, i32) {
    %c0_i32 = arith.constant 0 : i32
    %c0_i32_0 = arith.constant 0 : i32
    %c0_i32_1 = arith.constant 0 : i32
    return %arg0, %c0_i32, %c0_i32_0 : i32, i32, i32
  }
  func.func @transform_1(%arg0: i32) -> (i32, i32, i32) {
    %c0_i32 = arith.constant 0 : i32
    %c0_i32_0 = arith.constant 0 : i32
    %c0_i32_1 = arith.constant 0 : i32
    return %arg0, %c0_i32, %c0_i32_0 : i32, i32, i32
  }
}

</mosaic_0001>

<llo_original>
// kernel: tpu_custom_call.1
$region0: #{tpu_custom_call.1}
  #allocation0 [shape = 'u32[]', space=smem, size = 0x4, offset = 0x4, fixed_abs, tag = 'smem constant byte address 0x4 - core index']
  #allocation1 [shape = 'u32[144,128]{1,0:T(1,128)}', space=vmem, size = 0x12000, scoped, tag = 'internal scratch']
  %s0 = inlined_call_operand.hbm [shape: f32[8,16,16], index: 0, kind: input, shape index: {}]
  %s1 = inlined_call_operand.hbm [shape: f32[2,2,128], index: 1, kind: output, shape index: {}]
  %s2 = sld [smem:[#allocation0]]
  $region41: #{tpu_custom_call.1} parent=0
    _
  %s4 = ssub.s32 1, %s2
  %s5 = scalar_select 0, %s4, %s2
  $region1: #{tpu_custom_call.1} parent=0
    #allocation2 [shape = 'u8[65536]{0}', space=vmem, size = 0x10000, scoped, tag = 'input window, operand 0']
    #allocation3 [shape = 's32[2]{0}', space=sflag, size = 0x8, scoped, tag = 'scoped memory for tpu_custom_call.1']
    #allocation4 [shape = 's32[2]{0}', space=sflag, size = 0x8, scoped, tag = 'scoped memory for tpu_custom_call.1']
    #allocation5 [shape = 'u8[2048]{0}', space=vmem, size = 0x800, scoped, tag = 'output window, operand 0']
    %6 = vsyncpa [#allocation3], 0
    %s7 = scalar_lea.sflag [#allocation3], 1
    %8 = vsyncpa %s7, 0
    %9 = vsyncpa [#allocation4], 0
    %s10 = scalar_lea.sflag [#allocation4], 1
    %11 = vsyncpa %s10, 0
    loop: start=0, step=1, limit=4
    $region2: #{tpu_custom_call.1} parent=1 // loop_pre_header
      _
    $region3: #{tpu_custom_call.1} parent=1 // loop_header
      %s13 = sphi 0, %s17
      %p14 = scmp.ge.s32.totalorder %s13, 4
      %s23 = sphi 0, %s25
      %s26 = sphi 0, %s23
      %s27 = sphi 0, %s26
      %s43 = sphi 0, %s27
      %s49 = sphi 0, %s51
      %s52 = sphi 0, %s49
      %s53 = sphi 0, %s52
      %s69 = sphi 0, %s53
    $region4: #{tpu_custom_call.1} parent=1 // loop_header_branch
      %16 = sbr.rel (%p14) target = $region8
    $region5: #{tpu_custom_call.1} parent=1 // loop_body
      %s18 = ssub.s32 %s13, 1
      %s19 = ssub.s32 %s13, 2
      %s20 = sadd.s32 %s13, 1
      %s21 = ssub.s32 %s13, %s20
      %p22 = scmp.eq.s32.totalorder %s21, 0
      %s24 = sadd.s32 %s23, 1
      %s25 = scalar_select %p22, %s23, %s24
      %p28 = pneg %p22
      %p29 = scmp.eq.s32.totalorder %s13, 1
      %p30 = por %p28, %p29
      %p31 = scmp.ne.s32.totalorder %s23, %s26
      %p32 = scmp.eq.s32.totalorder %s13, 0
      %p33 = por %p31, %p32
      %p34 = scmp.ne.s32.totalorder %s23, %s26
      %p35 = scmp.eq.s32.totalorder %s18, 1
      %p36 = por %p34, %p35
      %p37 = scmp.ne.s32.totalorder %s26, %s27
      %p38 = scmp.eq.s32.totalorder %s18, 0
      %p39 = por %p37, %p38
      %p40 = scmp.ne.s32.totalorder %s26, %s27
      %p41 = scmp.eq.s32.totalorder %s19, 1
      %p42 = por %p40, %p41
      %p44 = scmp.ne.s32.totalorder %s27, %s43
      %p45 = scmp.eq.s32.totalorder %s19, 0
      %p46 = por %p44, %p45
      %s47 = ssub.s32 %s13, %s20
      %p48 = scmp.eq.s32.totalorder %s47, 0
      %s50 = sadd.s32 %s49, 1
      %s51 = scalar_select %p48, %s49, %s50
      %p54 = pneg %p48
      %p55 = scmp.eq.s32.totalorder %s13, 1
      %p56 = por %p54, %p55
      %p57 = scmp.ne.s32.totalorder %s49, %s52
      %p58 = scmp.eq.s32.totalorder %s13, 0
      %p59 = por %p57, %p58
      %p60 = scmp.ne.s32.totalorder %s49, %s52
      %p61 = scmp.eq.s32.totalorder %s18, 1
      %p62 = por %p60, %p61
      %p63 = scmp.ne.s32.totalorder %s52, %s53
      %p64 = scmp.eq.s32.totalorder %s18, 0
      %p65 = por %p63, %p64
      %p66 = scmp.ne.s32.totalorder %s52, %s53
      %p67 = scmp.eq.s32.totalorder %s19, 1
      %p68 = por %p66, %p67
      %p70 = scmp.ne.s32.totalorder %s53, %s69
      %p71 = scmp.eq.s32.totalorder %s19, 0
      %p72 = por %p70, %p71
      %p73 = scmp.le.s32.totalorder 1, %s13
      %p74 = scmp.lt.s32.totalorder %s13, 3
      %p75 = pnand %p73, %p74
      %p76 = pneg %p75
      // Predicated region
      $region9: #{tpu_custom_call.1} parent=5 // pred_check
        _
      $region10: #{tpu_custom_call.1} parent=5 // pred_check_branch
        %78 = sbr.rel (%p75) target = $region12
      $region11: #{tpu_custom_call.1} parent=5 // pred_region
        %s79 = ssub.s32 %s13, 1
      $region12: #{tpu_custom_call.1} parent=5 // pred_fallthru
        _
      %p80 = scmp.lt.s32.totalorder %s13, 2
      // Predicated region
      $region13: #{tpu_custom_call.1} parent=5 // pred_check
        %p81 = pneg %p80
      $region14: #{tpu_custom_call.1} parent=5 // pred_check_branch
        %83 = sbr.rel (%p81) target = $region16
      $region15: #{tpu_custom_call.1} parent=5 // pred_region
        // Predicated region
        $region17: #{tpu_custom_call.1} parent=15 // pred_check
          %p84 = pneg %p33
        $region18: #{tpu_custom_call.1} parent=15 // pred_check_branch
          %86 = sbr.rel (%p84) target = $region20
        $region19: #{tpu_custom_call.1} parent=15 // pred_region
          %s87 = sand.u32 %s23, 1
          %s88 = scalar_lea.sflag [#allocation3], %s87
          %s89 = sand.u32 %s23, 1
          %s90 = smul.addr %s89, 64
          %s91 = scalar_lea.vmem [#allocation2], %s90
          %s92 = smul.u32 4, %s13
          %s94 = ssub.s32 1024, 1024
          %95 = vsyncadd %s88, %s94
          %s96 = smul.addr %s92, 2
          %s97 = smul.addr %s96, 128
          %s98 = scalar_lea.hbm %s0, %s97
          %s99 = sshll.u32 %s91, 4
          %s100 = int_to_ptr.vmem [resolvable:$true] %s99
          %105 = dma.hbm_to_vmem [thread:$0]  %s98, 1024, %s100, %s88, 128, 128, 8
        $region20: #{tpu_custom_call.1} parent=15 // pred_fallthru
          _
      $region16: #{tpu_custom_call.1} parent=5 // pred_fallthru
        _
      %p106 = scmp.le.s32.totalorder 1, %s13
      %p107 = scmp.lt.s32.totalorder %s13, 3
      %p108 = pnand %p106, %p107
      %p109 = pneg %p108
      // Predicated region
      $region21: #{tpu_custom_call.1} parent=5 // pred_check
        _
      $region22: #{tpu_custom_call.1} parent=5 // pred_check_branch
        %111 = sbr.rel (%p108) target = $region24
      $region23: #{tpu_custom_call.1} parent=5 // pred_region
        %s112 = ssub.s32 %s13, 1
        %s113 = sand.u32 %s26, 1
        %s114 = scalar_lea.sflag [#allocation3], %s113
        %s115 = sand.u32 %s26, 1
        %s116 = smul.addr %s115, 64
        %s117 = scalar_lea.vmem [#allocation2], %s116
        // Predicated region
        $region25: #{tpu_custom_call.1} parent=23 // pred_check
          %p118 = pneg %p39
        $region26: #{tpu_custom_call.1} parent=23 // pred_check_branch
          %120 = sbr.rel (%p118) target = $region28
        $region27: #{tpu_custom_call.1} parent=23 // pred_region
          %121 = dma.done %s114, 1024
        $region28: #{tpu_custom_call.1} parent=23 // pred_fallthru
          _
        %s122 = sand.u32 %s26, 1
        %s123 = scalar_lea.sflag [#allocation3], %s122
        %s124 = sand.u32 %s26, 1
        %s125 = smul.addr %s124, 64
        %s126 = scalar_lea.vmem [#allocation2], %s125
        %p127 = pneg %p39
        %p128 = pneg %p36
        %p129 = pneg %p65
        %p130 = pneg %p62
        %s131 = sand.u32 %s52, 1
        %s132 = scalar_lea.sflag [#allocation4], %s131
        %s133 = sand.u32 %s52, 1
        %s134 = smul.addr %s133, 2
        %s135 = scalar_lea.vmem [#allocation5], %s134
        %s136 = smul.u32 4, %s18
        %v137 = vld [vmem:[%s117] sm:$0xff]
        %v138 = vld [vmem:[%s117 + $0x8] sm:$0xff]
        %v139 = vld [vmem:[%s117 + $0x10] sm:$0xff]
        %v140 = vld [vmem:[%s117 + $0x18] sm:$0xff]
        %v141 = vld [vmem:[%s117 + $0x20] sm:$0xff]
        %v142 = vld [vmem:[%s117 + $0x28] sm:$0xff]
        %v143 = vld [vmem:[%s117 + $0x30] sm:$0xff]
        %v144 = vld [vmem:[%s117 + $0x38] sm:$0xff]
        %v145 = vrot.slane %v137, 7
        %v146 = vrot.slane %v139, 7
        %v147 = vrot.slane %v141, 7
        %v148 = vrot.slane %v143, 7
        %v149 = vrot.slane %v138, 7
        %v150 = vrot.slane %v140, 7
        %v151 = vrot.slane %v142, 7
        %v152 = vrot.slane %v144, 7
        %v153 = vlaneseq
        %v154 = vshrl.u32 %v153, 7
        %vm155 = vcmp.lt.s32.totalorder %v154, 1
        %v156 = vsel %vm155, %v145, %v149
        %v157 = vsel %vm155, %v146, %v150
        %v158 = vsel %vm155, %v147, %v151
        %v159 = vsel %vm155, %v148, %v152
        %v160 = vsel %vm155, %v149, %v145
        %v161 = vsel %vm155, %v150, %v146
        %v162 = vsel %vm155, %v151, %v147
        %v163 = vsel %vm155, %v152, %v148
        %v164 = vsub.f32 %v137, %v160
        %v165 = vsub.f32 %v138, %v156
        %v166 = vsub.f32 %v139, %v161
        %v167 = vsub.f32 %v140, %v157
        %v168 = vsub.f32 %v141, %v162
        %v169 = vsub.f32 %v142, %v158
        %v170 = vsub.f32 %v143, %v163
        %v171 = vsub.f32 %v144, %v159
        %v172 = vand.u32 2147483647, %v164
        %v173 = vand.u32 2147483647, %v165
        %v174 = vand.u32 2147483647, %v166
        %v175 = vand.u32 2147483647, %v167
        %v176 = vand.u32 2147483647, %v168
        %v177 = vand.u32 2147483647, %v169
        %v178 = vand.u32 2147483647, %v170
        %v179 = vand.u32 2147483647, %v171
        %vm180 = vcmask 130048
        %v181 = vsel %vm180, %v172, 0.0
        %v182 = vsel %vm180, %v173, 0.0
        %v183 = vadd.f32 %v181, %v182
        %v184 = vsel %vm180, %v174, 0.0
        %v185 = vadd.f32 %v183, %v184
        %v186 = vsel %vm180, %v175, 0.0
        %v187 = vadd.f32 %v185, %v186
        %v188 = vsel %vm180, %v176, 0.0
        %v189 = vadd.f32 %v187, %v188
        %v190 = vsel %vm180, %v177, 0.0
        %v191 = vadd.f32 %v189, %v190
        %v192 = vsel %vm180, %v178, 0.0
        %v193 = vadd.f32 %v191, %v192
        %v194 = vsel %vm180, %v179, 0.0
        %v195 = vadd.f32 %v193, %v194
        %196 = vadd.xlane.f32.xlu0 %v195
        %v197 = vpop.xlane.xlu0 %196
        %v198 = vrot.slane %v197, 4
        %v199 = vadd.f32 %v197, %v198
        %v200 = vrot.slane %v199, 2
        %v201 = vadd.f32 %v199, %v200
        %v202 = vrot.slane %v201, 1
        %v203 = vadd.f32 %v201, %v202
        %s204 = vtos %v203
        %v209 = vrot.slane %v138, 7
        %v210 = vrot.slane %v140, 7
        %v211 = vrot.slane %v142, 7
        %v212 = vrot.slane %v144, 7
        %v217 = vsub.f32 %v137, %v209
        %v218 = vsub.f32 %v139, %v210
        %v219 = vsub.f32 %v141, %v211
        %v220 = vsub.f32 %v143, %v212
        %v221 = vand.u32 2147483647, %v217
        %v222 = vand.u32 2147483647, %v218
        %v223 = vand.u32 2147483647, %v219
        %v224 = vand.u32 2147483647, %v220
        %vm225 = vcmask 122880
        %v226 = vsel %vm225, %v221, 0.0
        %v227 = vsel %vm225, %v222, 0.0
        %v228 = vadd.f32 %v226, %v227
        %v229 = vsel %vm225, %v223, 0.0
        %v230 = vadd.f32 %v228, %v229
        %v231 = vsel %vm225, %v224, 0.0
        %v232 = vadd.f32 %v230, %v231
        %233 = vadd.xlane.f32.xlu0 %v232
        %v234 = vpop.xlane.xlu0 %233
        %v235 = vrot.slane %v234, 4
        %v236 = vadd.f32 %v234, %v235
        %v237 = vrot.slane %v236, 2
        %v238 = vadd.f32 %v236, %v237
        %v239 = vrot.slane %v238, 1
        %v240 = vadd.f32 %v238, %v239
        %s241 = vtos %v240
        %s242 = ssub.f32 %s204, %s241
        %vm243 = vcmask 1047680
        %244 = vrot.lane.b32.xlu0 %v137, 16
        %v245 = vpop.permute.xlu0 %244
        %v246 = vsel %vm243, %v245, %v137
        %247 = vrot.lane.b32.xlu0 %v138, 16
        %v248 = vpop.permute.xlu0 %247
        %v249 = vsel %vm243, %v248, %v138
        %250 = vrot.lane.b32.xlu0 %v139, 16
        %v251 = vpop.permute.xlu0 %250
        %v252 = vsel %vm243, %v251, %v139
        %253 = vrot.lane.b32.xlu0 %v140, 16
        %v254 = vpop.permute.xlu0 %253
        %v255 = vsel %vm243, %v254, %v140
        %256 = vrot.lane.b32.xlu0 %v141, 16
        %v257 = vpop.permute.xlu0 %256
        %v258 = vsel %vm243, %v257, %v141
        %259 = vrot.lane.b32.xlu0 %v142, 16
        %v260 = vpop.permute.xlu0 %259
        %v261 = vsel %vm243, %v260, %v142
        %262 = vrot.lane.b32.xlu0 %v143, 16
        %v263 = vpop.permute.xlu0 %262
        %v264 = vsel %vm243, %v263, %v143
        %265 = vrot.lane.b32.xlu0 %v144, 16
        %v266 = vpop.permute.xlu0 %265
        %v267 = vsel %vm243, %v266, %v144
        %268 = vrot.lane.b32.xlu0 %v246, 16
        %v269 = vpop.permute.xlu0 %268
        %270 = vrot.lane.b32.xlu0 %v249, 16
        %v271 = vpop.permute.xlu0 %270
        %272 = vrot.lane.b32.xlu0 %v252, 16
        %v273 = vpop.permute.xlu0 %272
        %274 = vrot.lane.b32.xlu0 %v255, 16
        %v275 = vpop.permute.xlu0 %274
        %276 = vrot.lane.b32.xlu0 %v258, 16
        %v277 = vpop.permute.xlu0 %276
        %278 = vrot.lane.b32.xlu0 %v261, 16
        %v279 = vpop.permute.xlu0 %278
        %280 = vrot.lane.b32.xlu0 %v264, 16
        %v281 = vpop.permute.xlu0 %280
        %282 = vrot.lane.b32.xlu0 %v267, 16
        %v283 = vpop.permute.xlu0 %282
        %v284 = vsel %vm243, %v269, %v137
        %v285 = vsel %vm243, %v271, %v138
        %v286 = vsel %vm243, %v273, %v139
        %v287 = vsel %vm243, %v275, %v140
        %v288 = vsel %vm243, %v277, %v141
        %v289 = vsel %vm243, %v279, %v142
        %v290 = vsel %vm243, %v281, %v143
        %v291 = vsel %vm243, %v283, %v144
        %300 = vrot.lane.b32.xlu0 %v284, 113
        %v301 = vpop.permute.xlu0 %300
        %302 = vrot.lane.b32.xlu0 %v285, 113
        %v303 = vpop.permute.xlu0 %302
        %304 = vrot.lane.b32.xlu0 %v286, 113
        %v305 = vpop.permute.xlu0 %304
        %306 = vrot.lane.b32.xlu0 %v287, 113
        %v307 = vpop.permute.xlu0 %306
        %308 = vrot.lane.b32.xlu0 %v288, 113
        %v309 = vpop.permute.xlu0 %308
        %310 = vrot.lane.b32.xlu0 %v289, 113
        %v311 = vpop.permute.xlu0 %310
        %312 = vrot.lane.b32.xlu0 %v290, 113
        %v313 = vpop.permute.xlu0 %312
        %314 = vrot.lane.b32.xlu0 %v291, 113
        %v315 = vpop.permute.xlu0 %314
        %v324 = vsub.f32 %v137, %v301
        %v325 = vsub.f32 %v138, %v303
        %v326 = vsub.f32 %v139, %v305
        %v327 = vsub.f32 %v140, %v307
        %v328 = vsub.f32 %v141, %v309
        %v329 = vsub.f32 %v142, %v311
        %v330 = vsub.f32 %v143, %v313
        %v331 = vsub.f32 %v144, %v315
        %v332 = vand.u32 2147483647, %v324
        %v333 = vand.u32 2147483647, %v325
        %v334 = vand.u32 2147483647, %v326
        %v335 = vand.u32 2147483647, %v327
        %v336 = vand.u32 2147483647, %v328
        %v337 = vand.u32 2147483647, %v329
        %v338 = vand.u32 2147483647, %v330
        %v339 = vand.u32 2147483647, %v331
        %v340 = vsel %vm180, %v332, 0.0
        %v341 = vsel %vm180, %v333, 0.0
        %v342 = vadd.f32 %v340, %v341
        %v343 = vsel %vm180, %v334, 0.0
        %v344 = vadd.f32 %v342, %v343
        %v345 = vsel %vm180, %v335, 0.0
        %v346 = vadd.f32 %v344, %v345
        %v347 = vsel %vm180, %v336, 0.0
        %v348 = vadd.f32 %v346, %v347
        %v349 = vsel %vm180, %v337, 0.0
        %v350 = vadd.f32 %v348, %v349
        %v351 = vsel %vm180, %v338, 0.0
        %v352 = vadd.f32 %v350, %v351
        %v353 = vsel %vm180, %v339, 0.0
        %v354 = vadd.f32 %v352, %v353
        %355 = vadd.xlane.f32.xlu0 %v354
        %v356 = vpop.xlane.xlu0 %355
        %v357 = vrot.slane %v356, 4
        %v358 = vadd.f32 %v356, %v357
        %v359 = vrot.slane %v358, 2
        %v360 = vadd.f32 %v358, %v359
        %v361 = vrot.slane %v360, 1
        %v362 = vadd.f32 %v360, %v361
        %s363 = vtos %v362
        %368 = vrot.lane.b32.xlu0 %v137, 113
        %v369 = vpop.permute.xlu0 %368
        %370 = vrot.lane.b32.xlu0 %v138, 113
        %v371 = vpop.permute.xlu0 %370
        %372 = vrot.lane.b32.xlu0 %v139, 113
        %v373 = vpop.permute.xlu0 %372
        %374 = vrot.lane.b32.xlu0 %v140, 113
        %v375 = vpop.permute.xlu0 %374
        %376 = vrot.lane.b32.xlu0 %v141, 113
        %v377 = vpop.permute.xlu0 %376
        %378 = vrot.lane.b32.xlu0 %v142, 113
        %v379 = vpop.permute.xlu0 %378
        %380 = vrot.lane.b32.xlu0 %v143, 113
        %v381 = vpop.permute.xlu0 %380
        %382 = vrot.lane.b32.xlu0 %v144, 113
        %v383 = vpop.permute.xlu0 %382
        %v392 = vsub.f32 %v137, %v369
        %v393 = vsub.f32 %v138, %v371
        %v394 = vsub.f32 %v139, %v373
        %v395 = vsub.f32 %v140, %v375
        %v396 = vsub.f32 %v141, %v377
        %v397 = vsub.f32 %v142, %v379
        %v398 = vsub.f32 %v143, %v381
        %v399 = vsub.f32 %v144, %v383
        %v400 = vand.u32 2147483647, %v392
        %v401 = vand.u32 2147483647, %v393
        %v402 = vand.u32 2147483647, %v394
        %v403 = vand.u32 2147483647, %v395
        %v404 = vand.u32 2147483647, %v396
        %v405 = vand.u32 2147483647, %v397
        %v406 = vand.u32 2147483647, %v398
        %v407 = vand.u32 2147483647, %v399
        %vm408 = vcmask 7168
        %v409 = vsel %vm408, %v400, 0.0
        %v410 = vsel %vm408, %v401, 0.0
        %v411 = vadd.f32 %v409, %v410
        %v412 = vsel %vm408, %v402, 0.0
        %v413 = vadd.f32 %v411, %v412
        %v414 = vsel %vm408, %v403, 0.0
        %v415 = vadd.f32 %v413, %v414
        %v416 = vsel %vm408, %v404, 0.0
        %v417 = vadd.f32 %v415, %v416
        %v418 = vsel %vm408, %v405, 0.0
        %v419 = vadd.f32 %v417, %v418
        %v420 = vsel %vm408, %v406, 0.0
        %v421 = vadd.f32 %v419, %v420
        %v422 = vsel %vm408, %v407, 0.0
        %v423 = vadd.f32 %v421, %v422
        %424 = vadd.xlane.f32.xlu0 %v423
        %v425 = vpop.xlane.xlu0 %424
        %v426 = vrot.slane %v425, 4
        %v427 = vadd.f32 %v425, %v426
        %v428 = vrot.slane %v427, 2
        %v429 = vadd.f32 %v427, %v428
        %v430 = vrot.slane %v429, 1
        %v431 = vadd.f32 %v429, %v430
        %s432 = vtos %v431
        %s433 = ssub.f32 %s363, %s432
        %v434 = vstv %s242
        %435 = vst [vmem:[%s135] sm:$0x1] %v434
        %v436 = vstv %s433
        %437 = vst [vmem:[%s135 + $0x1] sm:$0x1] %v436
        %s438 = sand.u32 %s52, 1
        %s439 = scalar_lea.sflag [#allocation4], %s438
        %s440 = sand.u32 %s52, 1
        %s441 = smul.addr %s440, 2
        %s442 = scalar_lea.vmem [#allocation5], %s441
        // Predicated region
        $region29: #{tpu_custom_call.1} parent=23 // pred_check
          %p443 = pneg %p62
        $region30: #{tpu_custom_call.1} parent=23 // pred_check_branch
          %445 = sbr.rel (%p443) target = $region32
        $region31: #{tpu_custom_call.1} parent=23 // pred_region
          %s447 = ssub.s32 32, 32
          %448 = vsyncadd %s439, %s447
          %s449 = smul.addr %s18, 32
          %s450 = scalar_lea.hbm %s1, %s449
          %s452 = sshll.u32 %s442, 4
          %s453 = int_to_ptr.vmem [resolvable:$true] %s452
          %455 = dma.vmem_to_hbm [thread:$0]  %s453, 32, %s450, %s439
        $region32: #{tpu_custom_call.1} parent=23 // pred_fallthru
          _
      $region24: #{tpu_custom_call.1} parent=5 // pred_fallthru
        _
      %p456 = scmp.le.s32.totalorder 2, %s13
      // Predicated region
      $region33: #{tpu_custom_call.1} parent=5 // pred_check
        %p457 = pneg %p456
      $region34: #{tpu_custom_call.1} parent=5 // pred_check_branch
        %459 = sbr.rel (%p457) target = $region36
      $region35: #{tpu_custom_call.1} parent=5 // pred_region
        %s460 = ssub.s32 %s13, 2
        // Predicated region
        $region37: #{tpu_custom_call.1} parent=35 // pred_check
          %p461 = pneg %p68
        $region38: #{tpu_custom_call.1} parent=35 // pred_check_branch
          %463 = sbr.rel (%p461) target = $region40
        $region39: #{tpu_custom_call.1} parent=35 // pred_region
          %s464 = sand.u32 %s53, 1
          %s465 = scalar_lea.sflag [#allocation4], %s464
          %s466 = sand.u32 %s53, 1
          %s467 = smul.addr %s466, 2
          %s468 = scalar_lea.vmem [#allocation5], %s467
          %469 = dma.done %s465, 32
        $region40: #{tpu_custom_call.1} parent=35 // pred_fallthru
          _
      $region36: #{tpu_custom_call.1} parent=5 // pred_fallthru
        _
    $region6: #{tpu_custom_call.1} parent=1 // loop_footer
      %s17 = sadd.s32 1, %s13
    $region7: #{tpu_custom_call.1} parent=1 // loop_footer_branch
      %12 = sbr.rel target = $region3
    $region8: #{tpu_custom_call.1} parent=1 // loop_exit
      _
    %470 = vsyncpa [#allocation3], 1
    %s471 = scalar_lea.sflag [#allocation3], 1
    %472 = vsyncpa %s471, 1
    %473 = vsyncpa [#allocation4], 1
    %s474 = scalar_lea.sflag [#allocation4], 1
    %475 = vsyncpa %s474, 1

</llo_original>
